<compile_context>
chip_gen: v7x
topology: tpu7x:2x2x1
jax: 0.10.0
libtpu: 0.0.40
codegen_flags: <defaults>
</compile_context>

<pallas_src>
import math

import jax
import jax.numpy as jnp
from jax.experimental import pallas as pl
from jax.experimental.pallas import tpu as pltpu


# ---------------------------------------------------------------------------
# Fused TimeEmbedding kernel: one-hot gather -> Linear -> Swish -> Linear
# ---------------------------------------------------------------------------
def _time_embedding_kernel(t_ref, table_ref, w1_ref, b1_ref, w2_ref, b2_ref,
                           o_ref):
    # t_ref:     (B, 1)  int32  — clamped timestep indices (VMEM)
    # table_ref: (Tp, d_model)  — zero-padded sinusoidal table (VMEM)
    # w1/w2 pre-transposed to (in, out); b1/b2 are (1, dim).
    B = t_ref.shape[0]
    Tp = table_ref.shape[0]

    # One-hot gather on the MXU (exact: exactly one 1.0 per row).
    iota = jax.lax.broadcasted_iota(jnp.int32, (B, Tp), 1)
    onehot = (iota == t_ref[...]).astype(jnp.float32)            # (B, Tp)
    e = jnp.dot(onehot, table_ref[...],
                preferred_element_type=jnp.float32)              # (B, d_model)

    # Linear(d_model, dim) + Swish
    h = jnp.dot(e, w1_ref[...], preferred_element_type=jnp.float32)
    h = h + b1_ref[...]
    h = h * jax.nn.sigmoid(h)                                    # Swish (EUP)

    # Linear(dim, dim)
    out = jnp.dot(h, w2_ref[...], preferred_element_type=jnp.float32)
    o_ref[...] = out + b2_ref[...]


def time_embedding_forward(params, t):
    """Pallas forward of PyTorch TimeEmbedding: table[t] -> Lin -> Swish -> Lin."""
    table = params["table"]                     # (Tp, d_model), zero-padded
    w1, b1 = params["w1"], params["b1"]
    w2, b2 = params["w2"], params["b2"]
    T = params["num_timesteps"]                 # valid (unpadded) extent

    B = t.shape[0]
    Tp, d_model = table.shape
    dim = w1.shape[1]

    # Bounds safety: clamp indices into the valid table range.
    t2 = jnp.clip(t.astype(jnp.int32), 0, T - 1).reshape(B, 1)

    flops = 2 * B * (Tp * d_model + d_model * dim + dim * dim)
    bytes_accessed = 4 * (B + Tp * d_model + d_model * dim + dim
                          + dim * dim + dim + B * dim)
    cost = pl.CostEstimate(flops=flops,
                           transcendentals=B * dim,
                           bytes_accessed=bytes_accessed)

    vmem = pl.BlockSpec(memory_space=pltpu.MemorySpace.VMEM)
    return pl.pallas_call(
        _time_embedding_kernel,
        out_shape=jax.ShapeDtypeStruct((B, dim), jnp.float32),
        in_specs=[vmem] * 6,
        out_specs=vmem,
        cost_estimate=cost,
    )(t2, table, w1, b1, w2, b2)


# ---------------------------------------------------------------------------
# Parameters (sinusoidal table exactly as the PyTorch constructor builds it)
# ---------------------------------------------------------------------------
def init_time_embedding(key, T, d_model, dim):
    assert d_model % 2 == 0
    half = jnp.exp(-jnp.arange(0, d_model, 2, dtype=jnp.float32) / d_model
                   * math.log(10000.0))
    pos = jnp.arange(T, dtype=jnp.float32)
    ang = pos[:, None] * half[None, :]                       # (T, d_model // 2)
    table = jnp.stack([jnp.sin(ang), jnp.cos(ang)], axis=-1).reshape(T, d_model)

    # Pad the sublane (row) extent to a clean multiple for the one-hot matmul.
    Tp = ((T + 127) // 128) * 128
    table = jnp.pad(table, ((0, Tp - T), (0, 0)))

    k1, k2, k3, k4 = jax.random.split(key, 4)
    # nn.Linear default init U(-1/sqrt(fan_in), 1/sqrt(fan_in)); weights are
    # stored pre-transposed as (in, out) so the kernel never transposes.
    lim1 = 1.0 / math.sqrt(d_model)
    lim2 = 1.0 / math.sqrt(dim)
    return {
        "table": table,
        "num_timesteps": T,
        "w1": jax.random.uniform(k1, (d_model, dim), jnp.float32, -lim1, lim1),
        "b1": jax.random.uniform(k2, (1, dim), jnp.float32, -lim1, lim1),
        "w2": jax.random.uniform(k3, (dim, dim), jnp.float32, -lim2, lim2),
        "b2": jax.random.uniform(k4, (1, dim), jnp.float32, -lim2, lim2),
    }


def time_embedding_reference(params, t):
    """Pure-JAX reference (full-f32 matmuls) for a correctness sanity check."""
    e = params["table"][t]
    h = jnp.dot(e, params["w1"], precision=jax.lax.Precision.HIGHEST) + params["b1"]
    h = h * jax.nn.sigmoid(h)
    return jnp.dot(h, params["w2"], precision=jax.lax.Precision.HIGHEST) + params["b2"]


# ---------------------------------------------------------------------------
if __name__ == "__main__":
    # Small shapes consistent with the module's use inside the diffusion UNet:
    # T=100 timesteps, d_model=32 (= ch), dim=128 (= ch*4), batch B=8.
    T, D_MODEL, DIM, B = 100, 32, 128, 8

    key = jax.random.PRNGKey(0)
    kp, kt = jax.random.split(key)
    params = init_time_embedding(kp, T, D_MODEL, DIM)
    t = jax.random.randint(kt, (B,), 0, T, dtype=jnp.int32)

    out = time_embedding_forward(params, t)
    out = jax.block_until_ready(out)
    assert out.shape == (B, DIM) and out.dtype == jnp.float32

    ref = time_embedding_reference(params, t)
    assert jnp.allclose(out, ref, rtol=1e-4, atol=5e-4), \
        float(jnp.max(jnp.abs(out - ref)))

    print("KERNEL_OK")
</pallas_src>

<mosaic_0001>
module attributes {stable_mosaic.version = 11 : i64} {
  func.func @_time_embedding_kernel(%arg0: memref<8x1xi32, #tpu.memory_space<vmem>>, %arg1: memref<128x32xf32, #tpu.memory_space<vmem>>, %arg2: memref<32x128xf32, #tpu.memory_space<vmem>>, %arg3: memref<1x128xf32, #tpu.memory_space<vmem>>, %arg4: memref<128x128xf32, #tpu.memory_space<vmem>>, %arg5: memref<1x128xf32, #tpu.memory_space<vmem>>, %arg6: memref<8x128xf32, #tpu.memory_space<vmem>>) attributes {dimension_semantics = [], scalar_prefetch = 0 : i64, scratch_operands = 0 : i64, tpu.core_type = #tpu.core_type<tc>} {
    %0 = tpu.iota {dimensions = array<i32: 1>} : vector<8x128xi32>
    %c0 = arith.constant 0 : index
    %c0_0 = arith.constant 0 : index
    %1 = vector.load %arg0[%c0, %c0_0] : memref<8x1xi32, #tpu.memory_space<vmem>>, vector<8x1xi32>
    %2 = vector.broadcast %1 : vector<8x1xi32> to vector<8x128xi32>
    %3 = arith.cmpi eq, %0, %2 : vector<8x128xi32>
    %4 = arith.extui %3 : vector<8x128xi1> to vector<8x128xi32>
    %5 = arith.sitofp %4 : vector<8x128xi32> to vector<8x128xf32>
    %c0_1 = arith.constant 0 : index
    %c0_2 = arith.constant 0 : index
    %6 = vector.load %arg1[%c0_1, %c0_2] : memref<128x32xf32, #tpu.memory_space<vmem>>, vector<128x32xf32>
    %cst = arith.constant dense<0.000000e+00> : vector<8x32xf32>
    %7 = tpu.matmul %5, %6, %cst {dimension_numbers = #tpu.dot_dimension_numbers<[1], [0], [0], [1], [0, 0, 1, 1], [], []>} : vector<8x128xf32>, vector<128x32xf32>, vector<8x32xf32> -> vector<8x32xf32>
    %c0_3 = arith.constant 0 : index
    %c0_4 = arith.constant 0 : index
    %8 = vector.load %arg2[%c0_3, %c0_4] : memref<32x128xf32, #tpu.memory_space<vmem>>, vector<32x128xf32>
    %cst_5 = arith.constant dense<0.000000e+00> : vector<8x128xf32>
    %9 = tpu.matmul %7, %8, %cst_5 {dimension_numbers = #tpu.dot_dimension_numbers<[1], [0], [0], [1], [0, 0, 1, 1], [], []>} : vector<8x32xf32>, vector<32x128xf32>, vector<8x128xf32> -> vector<8x128xf32>
    %c0_6 = arith.constant 0 : index
    %c0_7 = arith.constant 0 : index
    %10 = vector.load %arg3[%c0_6, %c0_7] : memref<1x128xf32, #tpu.memory_space<vmem>>, vector<1x128xf32>
    %11 = vector.broadcast %10 : vector<1x128xf32> to vector<8x128xf32>
    %12 = arith.addf %9, %11 : vector<8x128xf32>
    %13 = arith.negf %12 : vector<8x128xf32>
    %14 = math.exp %13 : vector<8x128xf32>
    %cst_8 = arith.constant 1.000000e+00 : f32
    %15 = vector.broadcast %cst_8 : f32 to vector<8x128xf32>
    %16 = arith.addf %15, %14 : vector<8x128xf32>
    %17 = arith.divf %15, %16 : vector<8x128xf32>
    %18 = arith.mulf %12, %17 : vector<8x128xf32>
    %c0_9 = arith.constant 0 : index
    %c0_10 = arith.constant 0 : index
    %19 = vector.load %arg4[%c0_9, %c0_10] : memref<128x128xf32, #tpu.memory_space<vmem>>, vector<128x128xf32>
    %cst_11 = arith.constant dense<0.000000e+00> : vector<8x128xf32>
    %20 = tpu.matmul %18, %19, %cst_11 {dimension_numbers = #tpu.dot_dimension_numbers<[1], [0], [0], [1], [0, 0, 1, 1], [], []>} : vector<8x128xf32>, vector<128x128xf32>, vector<8x128xf32> -> vector<8x128xf32>
    %c0_12 = arith.constant 0 : index
    %c0_13 = arith.constant 0 : index
    %21 = vector.load %arg5[%c0_12, %c0_13] : memref<1x128xf32, #tpu.memory_space<vmem>>, vector<1x128xf32>
    %22 = vector.broadcast %21 : vector<1x128xf32> to vector<8x128xf32>
    %23 = arith.addf %20, %22 : vector<8x128xf32>
    %c0_14 = arith.constant 0 : index
    %c0_15 = arith.constant 0 : index
    %24 = vector.load %arg6[%c0_14, %c0_15] : memref<8x128xf32, #tpu.memory_space<vmem>>, vector<8x128xf32>
    tpu.vector_store %arg6[%c0_14, %c0_15], %23 {strides = array<i32>} : memref<8x128xf32, #tpu.memory_space<vmem>>, vector<8x128xf32>,
    return
  }
}

</mosaic_0001>

<llo_original>
// kernel: tpu_custom_call.1
$region0: #{tpu_custom_call.1}
  #allocation0 [shape = 'u32[]', space=smem, size = 0x4, offset = 0x4, fixed_abs, tag = 'smem constant byte address 0x4 - core index']
  #allocation1 [shape = 'u32[144,128]{1,0:T(1,128)}', space=vmem, size = 0x12000, scoped, tag = 'internal scratch']
  %s0 = inlined_call_operand.vmem [shape: s32[8,1], index: 0, kind: input, shape index: {}]
  %s1 = inlined_call_operand.vmem [shape: f32[128,32], index: 1, kind: input, shape index: {}]
  %s2 = inlined_call_operand.vmem [shape: f32[32,128], index: 2, kind: input, shape index: {}]
  %s3 = inlined_call_operand.vmem [shape: f32[1,128], index: 3, kind: input, shape index: {}]
  %s4 = inlined_call_operand.vmem [shape: f32[128,128], index: 4, kind: input, shape index: {}]
  %s5 = inlined_call_operand.vmem [shape: f32[1,128], index: 5, kind: input, shape index: {}]
  %s6 = inlined_call_operand.hbm [shape: f32[8,128], index: 6, kind: output, shape index: {}]
  %s7 = sld [smem:[#allocation0]]
  $region34: #{tpu_custom_call.1} parent=0
    _
  %s9 = ssub.s32 1, %s7
  %s10 = scalar_select 0, %s9, %s7
  $region1: #{tpu_custom_call.1} parent=0
    #allocation2 [shape = 'u8[4096]{0}', space=vmem, size = 0x1000, scoped, tag = 'output window, operand 0, single buffered']
    #allocation3 [shape = 's32[1]{0}', space=sflag, size = 0x4, scoped, tag = 'scoped memory for tpu_custom_call.1']
    %11 = vsyncpa [#allocation3], 0
    // Predicated region
    $region2: #{tpu_custom_call.1} parent=1 // pred_check
      _
    $region3: #{tpu_custom_call.1} parent=1 // pred_check_branch
      %13 = sbr.rel (0) target = $region5
    $region4: #{tpu_custom_call.1} parent=1 // pred_region
      _
    $region5: #{tpu_custom_call.1} parent=1 // pred_fallthru
      _
    // Predicated region
    $region6: #{tpu_custom_call.1} parent=1 // pred_check
      _
    $region7: #{tpu_custom_call.1} parent=1 // pred_check_branch
      %15 = sbr.rel (0) target = $region9
    $region8: #{tpu_custom_call.1} parent=1 // pred_region
      _
    $region9: #{tpu_custom_call.1} parent=1 // pred_fallthru
      _
    // Predicated region
    $region10: #{tpu_custom_call.1} parent=1 // pred_check
      _
    $region11: #{tpu_custom_call.1} parent=1 // pred_check_branch
      %17 = sbr.rel (0) target = $region13
    $region12: #{tpu_custom_call.1} parent=1 // pred_region
      _
    $region13: #{tpu_custom_call.1} parent=1 // pred_fallthru
      _
    // Predicated region
    $region14: #{tpu_custom_call.1} parent=1 // pred_check
      _
    $region15: #{tpu_custom_call.1} parent=1 // pred_check_branch
      %19 = sbr.rel (0) target = $region17
    $region16: #{tpu_custom_call.1} parent=1 // pred_region
      _
    $region17: #{tpu_custom_call.1} parent=1 // pred_fallthru
      _
    // Predicated region
    $region18: #{tpu_custom_call.1} parent=1 // pred_check
      _
    $region19: #{tpu_custom_call.1} parent=1 // pred_check_branch
      %21 = sbr.rel (0) target = $region21
    $region20: #{tpu_custom_call.1} parent=1 // pred_region
      _
    $region21: #{tpu_custom_call.1} parent=1 // pred_fallthru
      _
    // Predicated region
    $region22: #{tpu_custom_call.1} parent=1 // pred_check
      _
    $region23: #{tpu_custom_call.1} parent=1 // pred_check_branch
      %23 = sbr.rel (0) target = $region25
    $region24: #{tpu_custom_call.1} parent=1 // pred_region
      _
    $region25: #{tpu_custom_call.1} parent=1 // pred_fallthru
      _
    %v24 = vlaneseq
    %v25 = vand.u32 %v24, 127
    %v26 = vld [vmem:[%s0] sm:$0xff]
    %27 = vset.pattern.permute.xlu0 0
    %28 = vperm.xlu0 %27, %v26
    %v29 = vpop.permute.xlu0 %28
    %vm30 = vcmp.eq.s32.totalorder %v25, %v29
    %v31 = vsel %vm30, 1, 0
    %v32 = vcvt.s32.f32 %v31
    %v33 = vld [vmem:[%s1] sm:$0xff]
    %v34 = vld [vmem:[%s1 + $0x8] sm:$0xff]
    %v35 = vld [vmem:[%s1 + $0x10] sm:$0xff]
    %v36 = vld [vmem:[%s1 + $0x18] sm:$0xff]
    %v37 = vld [vmem:[%s1 + $0x20] sm:$0xff]
    %v38 = vld [vmem:[%s1 + $0x28] sm:$0xff]
    %v39 = vld [vmem:[%s1 + $0x30] sm:$0xff]
    %v40 = vld [vmem:[%s1 + $0x38] sm:$0xff]
    %v41 = vld [vmem:[%s1 + $0x40] sm:$0xff]
    %v42 = vld [vmem:[%s1 + $0x48] sm:$0xff]
    %v43 = vld [vmem:[%s1 + $0x50] sm:$0xff]
    %v44 = vld [vmem:[%s1 + $0x58] sm:$0xff]
    %v45 = vld [vmem:[%s1 + $0x60] sm:$0xff]
    %v46 = vld [vmem:[%s1 + $0x68] sm:$0xff]
    %v47 = vld [vmem:[%s1 + $0x70] sm:$0xff]
    %v48 = vld [vmem:[%s1 + $0x78] sm:$0xff]
    %49 = vmatprep.subr.mxu0 0.0
    %50 = vmatpush1.msra.mxu0 %v33
    %51 = vmatprep.subr.mxu0 0.0
    %52 = vmatpush1.msra.mxu0 %v34
    %53 = vmatprep.subr.mxu0 0.0
    %54 = vmatpush1.msra.mxu0 %v35
    %55 = vmatprep.subr.mxu0 0.0
    %56 = vmatpush1.msra.mxu0 %v36
    %57 = vmatprep.subr.mxu0 0.0
    %58 = vmatpush1.msra.mxu0 %v37
    %59 = vmatprep.subr.mxu0 0.0
    %60 = vmatpush1.msra.mxu0 %v38
    %61 = vmatprep.subr.mxu0 0.0
    %62 = vmatpush1.msra.mxu0 %v39
    %63 = vmatprep.subr.mxu0 0.0
    %64 = vmatpush1.msra.mxu0 %v40
    %65 = vmatprep.subr.mxu0 0.0
    %66 = vmatpush1.msra.mxu0 %v41
    %67 = vmatprep.subr.mxu0 0.0
    %68 = vmatpush1.msra.mxu0 %v42
    %69 = vmatprep.subr.mxu0 0.0
    %70 = vmatpush1.msra.mxu0 %v43
    %71 = vmatprep.subr.mxu0 0.0
    %72 = vmatpush1.msra.mxu0 %v44
    %73 = vmatprep.subr.mxu0 0.0
    %74 = vmatpush1.msra.mxu0 %v45
    %75 = vmatprep.subr.mxu0 0.0
    %76 = vmatpush1.msra.mxu0 %v46
    %77 = vmatprep.subr.mxu0 0.0
    %78 = vmatpush1.msra.mxu0 %v47
    %79 = vmatprep.subr.mxu0 0.0
    %80 = vmatpush1.msra.mxu0 %v48
    %81 = vmatprep.subr.mxu0 0.0
    %82 = vmatpush1.msra.mxu0 0.0
    %83 = vmatprep.subr.mxu0 0.0
    %84 = vmatpush1.msra.mxu0 0.0
    %85 = vmatprep.subr.mxu0 0.0
    %86 = vmatpush1.msra.mxu0 0.0
    %87 = vmatprep.subr.mxu0 0.0
    %88 = vmatpush1.msra.mxu0 0.0
    %89 = vmatprep.subr.mxu0 0.0
    %90 = vmatpush1.msra.mxu0 0.0
    %91 = vmatprep.subr.mxu0 0.0
    %92 = vmatpush1.msra.mxu0 0.0
    %93 = vmatprep.subr.mxu0 0.0
    %94 = vmatpush1.msra.mxu0 0.0
    %95 = vmatprep.subr.mxu0 0.0
    %96 = vmatpush1.msra.mxu0 0.0
    %97 = vmatprep.subr.mxu0 0.0
    %98 = vmatpush1.msra.mxu0 0.0
    %99 = vmatprep.subr.mxu0 0.0
    %100 = vmatpush1.msra.mxu0 0.0
    %101 = vmatprep.subr.mxu0 0.0
    %102 = vmatpush1.msra.mxu0 0.0
    %103 = vmatprep.subr.mxu0 0.0
    %104 = vmatpush1.msra.mxu0 0.0
    %105 = vmatprep.subr.mxu0 0.0
    %106 = vmatpush1.msra.mxu0 0.0
    %107 = vmatprep.subr.mxu0 0.0
    %108 = vmatpush1.msra.mxu0 0.0
    %109 = vmatprep.subr.mxu0 0.0
    %110 = vmatpush1.msra.mxu0 0.0
    %111 = vmatprep.subr.mxu0 0.0
    %112 = vmatpush1.msra.mxu0 0.0
    %113 = vmatprep.mubr.f32.mxu0 0.0
    %114 = vmatmul.mubr.f32.gmra.mrb[0].mxu0 %v32
    %v115 = vpop.f32.mrb[0].mxu0
    %v116 = vadd.f32 0.0, %v115
    %v117 = vpop.f32.mrb[0].mxu0
    %118 = vdwg.mxu0
    %v119 = vld [vmem:[%s2] sm:$0xff]
    %v120 = vld [vmem:[%s2 + $0x8] sm:$0xff]
    %v121 = vld [vmem:[%s2 + $0x10] sm:$0xff]
    %v122 = vld [vmem:[%s2 + $0x18] sm:$0xff]
    %v123 = vld [vmem:[%s3] sm:$0x1]
    %v125 = vlaneseq
    %v126 = vshrl.u32 %v125, 7
    %v127 = vsub.s32 0, %v126
    %v128 = vrot.slane %v123, %v127
    %vm130 = vcmask 261120
    %v132 = vsel %vm130, %v116, 0
    %134 = vmatprep.subr.mxu0 0.0
    %135 = vmatpush1.msra.mxu0 %v119
    %136 = vmatprep.subr.mxu0 0.0
    %137 = vmatpush1.msra.mxu0 %v120
    %138 = vmatprep.subr.mxu0 0.0
    %139 = vmatpush1.msra.mxu0 %v121
    %140 = vmatprep.subr.mxu0 0.0
    %141 = vmatpush1.msra.mxu0 %v122
    %142 = vmatprep.subr.mxu0 0.0
    %143 = vmatpush1.msra.mxu0 0.0
    %144 = vmatprep.subr.mxu0 0.0
    %145 = vmatpush1.msra.mxu0 0.0
    %146 = vmatprep.subr.mxu0 0.0
    %147 = vmatpush1.msra.mxu0 0.0
    %148 = vmatprep.subr.mxu0 0.0
    %149 = vmatpush1.msra.mxu0 0.0
    %150 = vmatprep.subr.mxu0 0.0
    %151 = vmatpush1.msra.mxu0 0.0
    %152 = vmatprep.subr.mxu0 0.0
    %153 = vmatpush1.msra.mxu0 0.0
    %154 = vmatprep.subr.mxu0 0.0
    %155 = vmatpush1.msra.mxu0 0.0
    %156 = vmatprep.subr.mxu0 0.0
    %157 = vmatpush1.msra.mxu0 0.0
    %158 = vmatprep.subr.mxu0 0.0
    %159 = vmatpush1.msra.mxu0 0.0
    %160 = vmatprep.subr.mxu0 0.0
    %161 = vmatpush1.msra.mxu0 0.0
    %162 = vmatprep.subr.mxu0 0.0
    %163 = vmatpush1.msra.mxu0 0.0
    %164 = vmatprep.subr.mxu0 0.0
    %165 = vmatpush1.msra.mxu0 0.0
    %166 = vmatprep.subr.mxu0 0.0
    %167 = vmatpush1.msra.mxu0 0.0
    %168 = vmatprep.subr.mxu0 0.0
    %169 = vmatpush1.msra.mxu0 0.0
    %170 = vmatprep.subr.mxu0 0.0
    %171 = vmatpush1.msra.mxu0 0.0
    %172 = vmatprep.subr.mxu0 0.0
    %173 = vmatpush1.msra.mxu0 0.0
    %174 = vmatprep.subr.mxu0 0.0
    %175 = vmatpush1.msra.mxu0 0.0
    %176 = vmatprep.subr.mxu0 0.0
    %177 = vmatpush1.msra.mxu0 0.0
    %178 = vmatprep.subr.mxu0 0.0
    %179 = vmatpush1.msra.mxu0 0.0
    %180 = vmatprep.subr.mxu0 0.0
    %181 = vmatpush1.msra.mxu0 0.0
    %182 = vmatprep.subr.mxu0 0.0
    %183 = vmatpush1.msra.mxu0 0.0
    %184 = vmatprep.subr.mxu0 0.0
    %185 = vmatpush1.msra.mxu0 0.0
    %186 = vmatprep.subr.mxu0 0.0
    %187 = vmatpush1.msra.mxu0 0.0
    %188 = vmatprep.subr.mxu0 0.0
    %189 = vmatpush1.msra.mxu0 0.0
    %190 = vmatprep.subr.mxu0 0.0
    %191 = vmatpush1.msra.mxu0 0.0
    %192 = vmatprep.subr.mxu0 0.0
    %193 = vmatpush1.msra.mxu0 0.0
    %194 = vmatprep.subr.mxu0 0.0
    %195 = vmatpush1.msra.mxu0 0.0
    %196 = vmatprep.subr.mxu0 0.0
    %197 = vmatpush1.msra.mxu0 0.0
    %198 = vmatprep.mubr.f32.mxu0 0.0
    %199 = vmatmul.mubr.f32.gmra.mrb[0].mxu0 %v132
    %v200 = vpop.f32.mrb[0].mxu0
    %v201 = vadd.f32 %v128, %v200
    %v202 = vpop.f32.mrb[0].mxu0
    %203 = vdwg.mxu0
    %v204 = vxor.u32 %v201, 2147483648
    %v205 = vmul.f32 %v204, 1.442695
    %v206 = vpow.pop %v205
    %v207 = vadd.f32 %v206, 1.0
    %v208 = vrcp.pop %v207
    %v209 = vmul.f32 1.0, %v208
    %v210 = vmul.f32 %v201, %v209
    %v211 = vld [vmem:[%s4] sm:$0xff]
    %v212 = vld [vmem:[%s4 + $0x8] sm:$0xff]
    %v213 = vld [vmem:[%s4 + $0x10] sm:$0xff]
    %v214 = vld [vmem:[%s4 + $0x18] sm:$0xff]
    %v215 = vld [vmem:[%s4 + $0x20] sm:$0xff]
    %v216 = vld [vmem:[%s4 + $0x28] sm:$0xff]
    %v217 = vld [vmem:[%s4 + $0x30] sm:$0xff]
    %v218 = vld [vmem:[%s4 + $0x38] sm:$0xff]
    %v219 = vld [vmem:[%s4 + $0x40] sm:$0xff]
    %v220 = vld [vmem:[%s4 + $0x48] sm:$0xff]
    %v221 = vld [vmem:[%s4 + $0x50] sm:$0xff]
    %v222 = vld [vmem:[%s4 + $0x58] sm:$0xff]
    %v223 = vld [vmem:[%s4 + $0x60] sm:$0xff]
    %v224 = vld [vmem:[%s4 + $0x68] sm:$0xff]
    %v225 = vld [vmem:[%s4 + $0x70] sm:$0xff]
    %v226 = vld [vmem:[%s4 + $0x78] sm:$0xff]
    %v227 = vld [vmem:[%s5] sm:$0x1]
    %v229 = vlaneseq
    %v230 = vshrl.u32 %v229, 7
    %v231 = vsub.s32 0, %v230
    %v232 = vrot.slane %v227, %v231
    %234 = vmatprep.subr.mxu0 0.0
    %235 = vmatpush1.msra.mxu0 %v211
    %236 = vmatprep.subr.mxu0 0.0
    %237 = vmatpush1.msra.mxu0 %v212
    %238 = vmatprep.subr.mxu0 0.0
    %239 = vmatpush1.msra.mxu0 %v213
    %240 = vmatprep.subr.mxu0 0.0
    %241 = vmatpush1.msra.mxu0 %v214
    %242 = vmatprep.subr.mxu0 0.0
    %243 = vmatpush1.msra.mxu0 %v215
    %244 = vmatprep.subr.mxu0 0.0
    %245 = vmatpush1.msra.mxu0 %v216
    %246 = vmatprep.subr.mxu0 0.0
    %247 = vmatpush1.msra.mxu0 %v217
    %248 = vmatprep.subr.mxu0 0.0
    %249 = vmatpush1.msra.mxu0 %v218
    %250 = vmatprep.subr.mxu0 0.0
    %251 = vmatpush1.msra.mxu0 %v219
    %252 = vmatprep.subr.mxu0 0.0
    %253 = vmatpush1.msra.mxu0 %v220
    %254 = vmatprep.subr.mxu0 0.0
    %255 = vmatpush1.msra.mxu0 %v221
    %256 = vmatprep.subr.mxu0 0.0
    %257 = vmatpush1.msra.mxu0 %v222
    %258 = vmatprep.subr.mxu0 0.0
    %259 = vmatpush1.msra.mxu0 %v223
    %260 = vmatprep.subr.mxu0 0.0
    %261 = vmatpush1.msra.mxu0 %v224
    %262 = vmatprep.subr.mxu0 0.0
    %263 = vmatpush1.msra.mxu0 %v225
    %264 = vmatprep.subr.mxu0 0.0
    %265 = vmatpush1.msra.mxu0 %v226
    %266 = vmatprep.subr.mxu0 0.0
    %267 = vmatpush1.msra.mxu0 0.0
    %268 = vmatprep.subr.mxu0 0.0
    %269 = vmatpush1.msra.mxu0 0.0
    %270 = vmatprep.subr.mxu0 0.0
    %271 = vmatpush1.msra.mxu0 0.0
    %272 = vmatprep.subr.mxu0 0.0
    %273 = vmatpush1.msra.mxu0 0.0
    %274 = vmatprep.subr.mxu0 0.0
    %275 = vmatpush1.msra.mxu0 0.0
    %276 = vmatprep.subr.mxu0 0.0
    %277 = vmatpush1.msra.mxu0 0.0
    %278 = vmatprep.subr.mxu0 0.0
    %279 = vmatpush1.msra.mxu0 0.0
    %280 = vmatprep.subr.mxu0 0.0
    %281 = vmatpush1.msra.mxu0 0.0
    %282 = vmatprep.subr.mxu0 0.0
    %283 = vmatpush1.msra.mxu0 0.0
    %284 = vmatprep.subr.mxu0 0.0
    %285 = vmatpush1.msra.mxu0 0.0
    %286 = vmatprep.subr.mxu0 0.0
    %287 = vmatpush1.msra.mxu0 0.0
    %288 = vmatprep.subr.mxu0 0.0
    %289 = vmatpush1.msra.mxu0 0.0
    %290 = vmatprep.subr.mxu0 0.0
    %291 = vmatpush1.msra.mxu0 0.0
    %292 = vmatprep.subr.mxu0 0.0
    %293 = vmatpush1.msra.mxu0 0.0
    %294 = vmatprep.subr.mxu0 0.0
    %295 = vmatpush1.msra.mxu0 0.0
    %296 = vmatprep.subr.mxu0 0.0
    %297 = vmatpush1.msra.mxu0 0.0
    %298 = vmatprep.mubr.f32.mxu0 0.0
    %299 = vmatmul.mubr.f32.gmra.mrb[0].mxu0 %v210
    %v300 = vpop.f32.mrb[0].mxu0
    %v301 = vadd.f32 %v232, %v300
    %v302 = vpop.f32.mrb[0].mxu0
    %303 = vdwg.mxu0
    %304 = vst [vmem:[#allocation2] sm:$0xff] %v301
    // Predicated region
    $region26: #{tpu_custom_call.1} parent=1 // pred_check
      _
    $region27: #{tpu_custom_call.1} parent=1 // pred_check_branch
      %306 = sbr.rel (0) target = $region29
    $region28: #{tpu_custom_call.1} parent=1 // pred_region
      %s308 = ssub.s32 128, 128
      %309 = vsyncadd [#allocation3], %s308
      %s311 = sshll.u32 [#allocation2], 4
      %s312 = int_to_ptr.vmem [resolvable:$true] %s311
      %314 = dma.vmem_to_hbm [thread:$0]  %s312, 128, %s6, [#allocation3]
    $region29: #{tpu_custom_call.1} parent=1 // pred_fallthru
      _
    // Predicated region
    $region30: #{tpu_custom_call.1} parent=1 // pred_check
      _
    $region31: #{tpu_custom_call.1} parent=1 // pred_check_branch
      %316 = sbr.rel (0) target = $region33
    $region32: #{tpu_custom_call.1} parent=1 // pred_region
      %317 = dma.done [#allocation3], 128
    $region33: #{tpu_custom_call.1} parent=1 // pred_fallthru
      _
    %318 = vsyncpa [#allocation3], 1

</llo_original>
